<compile_context>
chip_gen: v5e
topology: v5e:2x2
jax: 0.10.0
libtpu: 0.0.40
codegen_flags: <defaults>
</compile_context>

<pallas_src>
import functools

import jax
import jax.numpy as jnp
from jax import lax
from jax.experimental import pallas as pl
from jax.experimental.pallas import tpu as pltpu


def _rnn_block_kernel(x_ref, h0_ref, w1x_ref, w1h_ref, b1_ref, w2_ref, b2_ref,
                      out_ref, hfin_ref, h_scr, hstage_scr,
                      *, tt, total_steps, guard_tail):
    blk = pl.program_id(0)

    # Load the initial hidden state into the resident scratch once.
    @pl.when(blk == 0)
    def _():
        h_scr[...] = h0_ref[...].astype(jnp.float32)

    _, bsz, obs_dim = x_ref.shape
    nhidden = h_scr.shape[-1]

    # ---- Non-recurrent x-path, vectorized over the whole time block ----
    x = x_ref[...].astype(jnp.float32)            # (TT, B, obs_dim)
    w1x = w1x_ref[...].astype(jnp.float32)        # (obs_dim, nhidden)
    b1 = b1_ref[...].astype(jnp.float32)          # (1, nhidden)
    if obs_dim == 1:
        # Depth-1 contraction: pure VPU broadcast, no MXU push/pop for K=1.
        xpath = x * w1x + b1                      # (TT, B, nhidden)
    else:
        xpath = (jnp.dot(x.reshape(tt * bsz, obs_dim), w1x,
                         preferred_element_type=jnp.float32)
                 .reshape(tt, bsz, nhidden) + b1)

    # Stage the pre-computed x-path; each loop step overwrites its row with
    # h_new, so this scratch doubles as the h2o input buffer (no concat).
    hstage_scr[...] = xpath

    # Hoisted out of the recurrence: weight load + broadcasts happen once.
    w1h = w1h_ref[...].astype(jnp.float32)        # (nhidden, nhidden)
    base = blk * tt

    def step(i, h):
        pre = hstage_scr[i] + jnp.dot(h, w1h, preferred_element_type=jnp.float32)
        h_new = jnp.tanh(pre)
        hstage_scr[i] = h_new
        if guard_tail:
            # Padded tail steps must not advance the carried hidden state.
            h_new = jnp.where(base + i < total_steps, h_new, h)
        return h_new

    h = lax.fori_loop(0, tt, step, h_scr[...], unroll=(tt <= 32))
    h_scr[...] = h
    hfin_ref[...] = h.astype(hfin_ref.dtype)

    # ---- Batched output projection: one MXU call with M = TT*B rows ----
    w2 = w2_ref[...].astype(jnp.float32)          # (nhidden, out_dim)
    b2 = b2_ref[...].astype(jnp.float32)          # (1, out_dim)
    hs = hstage_scr[...].reshape(tt * bsz, nhidden)
    out = jnp.dot(hs, w2, preferred_element_type=jnp.float32) + b2
    out_ref[...] = out.reshape(tt, bsz, -1).astype(out_ref.dtype)


def prepare_params(params, obs_dim):
    """One-time layout prep (hoisted out of the step loop): split i2h into its
    x-part and h-part and transpose everything to (in_features, out_features)."""
    w_i2h, b_i2h = params["i2h_w"], params["i2h_b"]
    w_h2o, b_h2o = params["h2o_w"], params["h2o_b"]
    nhidden = w_i2h.shape[0]
    out_dim = w_h2o.shape[0]
    return {
        "w1x": jnp.transpose(w_i2h[:, :obs_dim]),   # (obs_dim, nhidden)
        "w1h": jnp.transpose(w_i2h[:, obs_dim:]),   # (nhidden, nhidden)
        "b1": b_i2h.reshape(1, nhidden),
        "w2": jnp.transpose(w_h2o),                 # (nhidden, out_dim)
        "b2": b_h2o.reshape(1, out_dim),
    }


def recognition_rnn_sequence(xs, h0, prep, *, time_block=128):
    """Run the RecognitionRNN forward over a whole sequence in ONE pallas_call.

    xs: (T, B, obs_dim), h0: (B, nhidden), prep: output of prepare_params().
    Returns (outs (T, B, 2*latent_dim), h_final (B, nhidden)).
    """
    T, B, obs_dim = xs.shape
    nhidden = h0.shape[1]
    out_dim = prep["w2"].shape[1]

    # Time-blocking: TT local steps per grid step, padded to a full block.
    TT = max(1, min(time_block, T))
    n_blocks = pl.cdiv(T, TT)
    T_pad = n_blocks * TT
    if T_pad != T:
        xs_in = jnp.concatenate(
            [xs, jnp.zeros((T_pad - T, B, obs_dim), xs.dtype)], axis=0)
    else:
        xs_in = xs

    kernel = functools.partial(
        _rnn_block_kernel, tt=TT, total_steps=T, guard_tail=(T_pad != T))

    # Resident blocks: same block index every grid step -> stay in VMEM,
    # DMA'd from HBM exactly once for the whole sequence.
    def resident(shp):
        return pl.BlockSpec(shp, lambda t, _n=len(shp): (0,) * _n)

    outs, h_final = pl.pallas_call(
        kernel,
        out_shape=(
            jax.ShapeDtypeStruct((T_pad, B, out_dim), xs.dtype),
            jax.ShapeDtypeStruct((B, nhidden), h0.dtype),
        ),
        grid=(n_blocks,),
        in_specs=[
            pl.BlockSpec((TT, B, obs_dim), lambda t: (t, 0, 0)),  # x streamed per block
            resident((B, nhidden)),                               # h0
            resident((obs_dim, nhidden)),                         # w1x
            resident((nhidden, nhidden)),                         # w1h
            resident((1, nhidden)),                               # b1
            resident((nhidden, out_dim)),                         # w2
            resident((1, out_dim)),                               # b2
        ],
        out_specs=(
            pl.BlockSpec((TT, B, out_dim), lambda t: (t, 0, 0)),  # outs per block
            pl.BlockSpec((B, nhidden), lambda t: (0, 0)),         # h_final (resident)
        ),
        scratch_shapes=[
            pltpu.VMEM((B, nhidden), jnp.float32),       # h carry
            pltpu.VMEM((TT, B, nhidden), jnp.float32),   # xpath / h_new staging
        ],
        compiler_params=pltpu.CompilerParams(
            dimension_semantics=("arbitrary",)),  # time axis carries state
    )(xs_in, h0, prep["w1x"], prep["w1h"], prep["b1"], prep["w2"], prep["b2"])

    if T_pad != T:
        outs = outs[:T]
    return outs, h_final


def recognition_rnn_forward(x, h, prep):
    """Single-step forward matching the PyTorch module: returns (out, h_new)."""
    outs, h_final = recognition_rnn_sequence(x[None], h, prep)
    return outs[0], h_final


def init_params(key, latent_dim=4, obs_dim=1, nhidden=25):
    """Deterministic init mimicking nn.Linear default (uniform(-1/sqrt(fan_in), +))."""
    k1, k2, k3, k4 = jax.random.split(key, 4)
    fan1 = obs_dim + nhidden
    bound1 = 1.0 / jnp.sqrt(fan1)
    fan2 = nhidden
    bound2 = 1.0 / jnp.sqrt(fan2)
    return {
        "i2h_w": jax.random.uniform(k1, (nhidden, fan1), jnp.float32, -bound1, bound1),
        "i2h_b": jax.random.uniform(k2, (nhidden,), jnp.float32, -bound1, bound1),
        "h2o_w": jax.random.uniform(k3, (latent_dim * 2, nhidden), jnp.float32, -bound2, bound2),
        "h2o_b": jax.random.uniform(k4, (latent_dim * 2,), jnp.float32, -bound2, bound2),
    }


def _reference_step(x, h, params):
    combined = jnp.concatenate([x, h], axis=1)
    h_new = jnp.tanh(combined @ params["i2h_w"].T + params["i2h_b"])
    out = h_new @ params["h2o_w"].T + params["h2o_b"]
    return out, h_new


if __name__ == "__main__":
    latent_dim, obs_dim, nhidden, nbatch, T = 4, 1, 25, 2, 8

    key = jax.random.PRNGKey(0)
    kp, kx, kh = jax.random.split(key, 3)
    params = init_params(kp, latent_dim=latent_dim, obs_dim=obs_dim, nhidden=nhidden)
    prep = prepare_params(params, obs_dim)

    xs = jax.random.normal(kx, (T, nbatch, obs_dim), jnp.float32)
    h0 = jax.random.normal(kh, (nbatch, nhidden), jnp.float32)

    # Reference: apply the PyTorch single-step forward T times.
    h_ref = h0
    outs_ref = []
    for t in range(T):
        o_ref, h_ref = _reference_step(xs[t], h_ref, params)
        outs_ref.append(o_ref)
    outs_ref = jnp.stack(outs_ref, axis=0)

    # --- fused sequence kernel: whole sequence in one time block ---
    outs, h_final = recognition_rnn_sequence(xs, h0, prep)
    jax.block_until_ready((outs, h_final))
    assert outs.shape == (T, nbatch, latent_dim * 2)
    assert h_final.shape == (nbatch, nhidden)
    assert jnp.allclose(outs, outs_ref, atol=1e-4), "sequence out mismatch"
    assert jnp.allclose(h_final, h_ref, atol=1e-4), "sequence h mismatch"

    # --- multi-block path with padded tail (T=8, TT=3 -> 3 blocks, 1 pad step) ---
    outs_b, h_final_b = recognition_rnn_sequence(xs, h0, prep, time_block=3)
    jax.block_until_ready((outs_b, h_final_b))
    assert jnp.allclose(outs_b, outs_ref, atol=1e-4), "blocked out mismatch"
    assert jnp.allclose(h_final_b, h_ref, atol=1e-4), "blocked h mismatch"

    # --- single-step forward (module semantics) ---
    out1, h1 = recognition_rnn_forward(xs[0], h0, prep)
    jax.block_until_ready((out1, h1))
    out1_ref, h1_ref = _reference_step(xs[0], h0, params)
    assert jnp.allclose(out1, out1_ref, atol=1e-5), "single-step out mismatch"
    assert jnp.allclose(h1, h1_ref, atol=1e-5), "single-step h mismatch"

    print("KERNEL_OK")
</pallas_src>

<mosaic_0001>
module attributes {stable_mosaic.version = 11 : i64} {
  func.func @_rnn_block_kernel(%arg0: i32, %arg1: memref<8x2x1xf32, #tpu.memory_space<vmem>>, %arg2: memref<2x25xf32, #tpu.memory_space<vmem>>, %arg3: memref<1x25xf32, #tpu.memory_space<vmem>>, %arg4: memref<25x25xf32, #tpu.memory_space<vmem>>, %arg5: memref<1x25xf32, #tpu.memory_space<vmem>>, %arg6: memref<25x8xf32, #tpu.memory_space<vmem>>, %arg7: memref<1x8xf32, #tpu.memory_space<vmem>>, %arg8: memref<8x2x8xf32, #tpu.memory_space<vmem>>, %arg9: memref<2x25xf32, #tpu.memory_space<vmem>>, %arg10: memref<2x25xf32, #tpu.memory_space<vmem>>, %arg11: memref<8x2x25xf32, #tpu.memory_space<vmem>>) attributes {dimension_semantics = [#tpu.dimension_semantics<arbitrary>], iteration_bounds = array<i64: 1>, scalar_prefetch = 0 : i64, scratch_operands = 2 : i64, tpu.core_type = #tpu.core_type<tc>, window_params = [{transform_indices = @transform_0, window_bounds = array<i64: 8, 2, 1>}, {pipeline_mode = #tpu.pipeline_mode<synchronous>, transform_indices = @transform_1, window_bounds = array<i64: 2, 25>}, {pipeline_mode = #tpu.pipeline_mode<synchronous>, transform_indices = @transform_2, window_bounds = array<i64: 1, 25>}, {pipeline_mode = #tpu.pipeline_mode<synchronous>, transform_indices = @transform_3, window_bounds = array<i64: 25, 25>}, {pipeline_mode = #tpu.pipeline_mode<synchronous>, transform_indices = @transform_4, window_bounds = array<i64: 1, 25>}, {pipeline_mode = #tpu.pipeline_mode<synchronous>, transform_indices = @transform_5, window_bounds = array<i64: 25, 8>}, {pipeline_mode = #tpu.pipeline_mode<synchronous>, transform_indices = @transform_6, window_bounds = array<i64: 1, 8>}, {transform_indices = @transform_7, window_bounds = array<i64: 8, 2, 8>}, {pipeline_mode = #tpu.pipeline_mode<synchronous>, transform_indices = @transform_8, window_bounds = array<i64: 2, 25>}]} {
    %c0_i32 = arith.constant 0 : i32
    %0 = arith.cmpi eq, %arg0, %c0_i32 : i32
    %1 = arith.extui %0 : i1 to i32
    %c0_i32_0 = arith.constant 0 : i32
    %2 = arith.cmpi ne, %1, %c0_i32_0 : i32
    scf.if %2 {
      %c0_69 = arith.constant 0 : index
      %c0_70 = arith.constant 0 : index
      %107 = vector.load %arg2[%c0_69, %c0_70] : memref<2x25xf32, #tpu.memory_space<vmem>>, vector<2x25xf32>
      %c0_71 = arith.constant 0 : index
      %c0_72 = arith.constant 0 : index
      %108 = vector.load %arg10[%c0_71, %c0_72] : memref<2x25xf32, #tpu.memory_space<vmem>>, vector<2x25xf32>
      tpu.vector_store %arg10[%c0_71, %c0_72], %107 {strides = array<i32>} : memref<2x25xf32, #tpu.memory_space<vmem>>, vector<2x25xf32>,
    } else {
    }
    %c0 = arith.constant 0 : index
    %c0_1 = arith.constant 0 : index
    %c0_2 = arith.constant 0 : index
    %3 = vector.load %arg1[%c0, %c0_1, %c0_2] : memref<8x2x1xf32, #tpu.memory_space<vmem>>, vector<8x2x1xf32>
    %c0_3 = arith.constant 0 : index
    %c0_4 = arith.constant 0 : index
    %4 = vector.load %arg3[%c0_3, %c0_4] : memref<1x25xf32, #tpu.memory_space<vmem>>, vector<1x25xf32>
    %c0_5 = arith.constant 0 : index
    %c0_6 = arith.constant 0 : index
    %5 = vector.load %arg5[%c0_5, %c0_6] : memref<1x25xf32, #tpu.memory_space<vmem>>, vector<1x25xf32>
    %6 = vector.shape_cast %4 : vector<1x25xf32> to vector<1x1x25xf32>
    %7 = vector.broadcast %3 : vector<8x2x1xf32> to vector<8x2x25xf32>
    %8 = vector.broadcast %6 : vector<1x1x25xf32> to vector<8x2x25xf32>
    %9 = arith.mulf %7, %8 : vector<8x2x25xf32>
    %10 = vector.shape_cast %5 : vector<1x25xf32> to vector<1x1x25xf32>
    %11 = vector.broadcast %10 : vector<1x1x25xf32> to vector<8x2x25xf32>
    %12 = arith.addf %9, %11 : vector<8x2x25xf32>
    %c0_7 = arith.constant 0 : index
    %c0_8 = arith.constant 0 : index
    %c0_9 = arith.constant 0 : index
    %13 = vector.load %arg11[%c0_7, %c0_8, %c0_9] : memref<8x2x25xf32, #tpu.memory_space<vmem>>, vector<8x2x25xf32>
    tpu.vector_store %arg11[%c0_7, %c0_8, %c0_9], %12 {strides = array<i32>} : memref<8x2x25xf32, #tpu.memory_space<vmem>>, vector<8x2x25xf32>,
    %c0_10 = arith.constant 0 : index
    %c0_11 = arith.constant 0 : index
    %14 = vector.load %arg4[%c0_10, %c0_11] : memref<25x25xf32, #tpu.memory_space<vmem>>, vector<25x25xf32>
    %c0_12 = arith.constant 0 : index
    %c0_13 = arith.constant 0 : index
    %15 = vector.load %arg10[%c0_12, %c0_13] : memref<2x25xf32, #tpu.memory_space<vmem>>, vector<2x25xf32>
    %c0_i32_14 = arith.constant 0 : i32
    %16 = arith.index_cast %c0_i32_14 : i32 to index
    %c0_15 = arith.constant 0 : index
    %c0_16 = arith.constant 0 : index
    %17 = vector.load %arg11[%16, %c0_15, %c0_16] : memref<8x2x25xf32, #tpu.memory_space<vmem>>, vector<1x2x25xf32>
    %18 = vector.shape_cast %17 : vector<1x2x25xf32> to vector<2x25xf32>
    %cst = arith.constant dense<0.000000e+00> : vector<2x25xf32>
    %19 = tpu.matmul %15, %14, %cst {dimension_numbers = #tpu.dot_dimension_numbers<[1], [0], [0], [1], [0, 0, 1, 1], [], []>} : vector<2x25xf32>, vector<25x25xf32>, vector<2x25xf32> -> vector<2x25xf32>
    %20 = arith.addf %18, %19 : vector<2x25xf32>
    %21 = math.tanh %20 : vector<2x25xf32>
    %22 = arith.index_cast %c0_i32_14 : i32 to index
    %c0_17 = arith.constant 0 : index
    %c0_18 = arith.constant 0 : index
    %23 = vector.load %arg11[%22, %c0_17, %c0_18] : memref<8x2x25xf32, #tpu.memory_space<vmem>>, vector<1x2x25xf32>
    %24 = vector.shape_cast %23 : vector<1x2x25xf32> to vector<2x25xf32>
    %25 = vector.shape_cast %21 : vector<2x25xf32> to vector<1x2x25xf32>
    tpu.vector_store %arg11[%22, %c0_17, %c0_18], %25 {strides = array<i32>} : memref<8x2x25xf32, #tpu.memory_space<vmem>>, vector<1x2x25xf32>,
    %c1_i32 = arith.constant 1 : i32
    %26 = arith.index_cast %c1_i32 : i32 to index
    %c0_19 = arith.constant 0 : index
    %c0_20 = arith.constant 0 : index
    %27 = vector.load %arg11[%26, %c0_19, %c0_20] : memref<8x2x25xf32, #tpu.memory_space<vmem>>, vector<1x2x25xf32>
    %28 = vector.shape_cast %27 : vector<1x2x25xf32> to vector<2x25xf32>
    %cst_21 = arith.constant dense<0.000000e+00> : vector<2x25xf32>
    %29 = tpu.matmul %21, %14, %cst_21 {dimension_numbers = #tpu.dot_dimension_numbers<[1], [0], [0], [1], [0, 0, 1, 1], [], []>} : vector<2x25xf32>, vector<25x25xf32>, vector<2x25xf32> -> vector<2x25xf32>
    %30 = arith.addf %28, %29 : vector<2x25xf32>
    %31 = math.tanh %30 : vector<2x25xf32>
    %32 = arith.index_cast %c1_i32 : i32 to index
    %c0_22 = arith.constant 0 : index
    %c0_23 = arith.constant 0 : index
    %33 = vector.load %arg11[%32, %c0_22, %c0_23] : memref<8x2x25xf32, #tpu.memory_space<vmem>>, vector<1x2x25xf32>
    %34 = vector.shape_cast %33 : vector<1x2x25xf32> to vector<2x25xf32>
    %35 = vector.shape_cast %31 : vector<2x25xf32> to vector<1x2x25xf32>
    tpu.vector_store %arg11[%32, %c0_22, %c0_23], %35 {strides = array<i32>} : memref<8x2x25xf32, #tpu.memory_space<vmem>>, vector<1x2x25xf32>,
    %c2_i32 = arith.constant 2 : i32
    %36 = arith.index_cast %c2_i32 : i32 to index
    %c0_24 = arith.constant 0 : index
    %c0_25 = arith.constant 0 : index
    %37 = vector.load %arg11[%36, %c0_24, %c0_25] : memref<8x2x25xf32, #tpu.memory_space<vmem>>, vector<1x2x25xf32>
    %38 = vector.shape_cast %37 : vector<1x2x25xf32> to vector<2x25xf32>
    %cst_26 = arith.constant dense<0.000000e+00> : vector<2x25xf32>
    %39 = tpu.matmul %31, %14, %cst_26 {dimension_numbers = #tpu.dot_dimension_numbers<[1], [0], [0], [1], [0, 0, 1, 1], [], []>} : vector<2x25xf32>, vector<25x25xf32>, vector<2x25xf32> -> vector<2x25xf32>
    %40 = arith.addf %38, %39 : vector<2x25xf32>
    %41 = math.tanh %40 : vector<2x25xf32>
    %42 = arith.index_cast %c2_i32 : i32 to index
    %c0_27 = arith.constant 0 : index
    %c0_28 = arith.constant 0 : index
    %43 = vector.load %arg11[%42, %c0_27, %c0_28] : memref<8x2x25xf32, #tpu.memory_space<vmem>>, vector<1x2x25xf32>
    %44 = vector.shape_cast %43 : vector<1x2x25xf32> to vector<2x25xf32>
    %45 = vector.shape_cast %41 : vector<2x25xf32> to vector<1x2x25xf32>
    tpu.vector_store %arg11[%42, %c0_27, %c0_28], %45 {strides = array<i32>} : memref<8x2x25xf32, #tpu.memory_space<vmem>>, vector<1x2x25xf32>,
    %c3_i32 = arith.constant 3 : i32
    %46 = arith.index_cast %c3_i32 : i32 to index
    %c0_29 = arith.constant 0 : index
    %c0_30 = arith.constant 0 : index
    %47 = vector.load %arg11[%46, %c0_29, %c0_30] : memref<8x2x25xf32, #tpu.memory_space<vmem>>, vector<1x2x25xf32>
    %48 = vector.shape_cast %47 : vector<1x2x25xf32> to vector<2x25xf32>
    %cst_31 = arith.constant dense<0.000000e+00> : vector<2x25xf32>
    %49 = tpu.matmul %41, %14, %cst_31 {dimension_numbers = #tpu.dot_dimension_numbers<[1], [0], [0], [1], [0, 0, 1, 1], [], []>} : vector<2x25xf32>, vector<25x25xf32>, vector<2x25xf32> -> vector<2x25xf32>
    %50 = arith.addf %48, %49 : vector<2x25xf32>
    %51 = math.tanh %50 : vector<2x25xf32>
    %52 = arith.index_cast %c3_i32 : i32 to index
    %c0_32 = arith.constant 0 : index
    %c0_33 = arith.constant 0 : index
    %53 = vector.load %arg11[%52, %c0_32, %c0_33] : memref<8x2x25xf32, #tpu.memory_space<vmem>>, vector<1x2x25xf32>
    %54 = vector.shape_cast %53 : vector<1x2x25xf32> to vector<2x25xf32>
    %55 = vector.shape_cast %51 : vector<2x25xf32> to vector<1x2x25xf32>
    tpu.vector_store %arg11[%52, %c0_32, %c0_33], %55 {strides = array<i32>} : memref<8x2x25xf32, #tpu.memory_space<vmem>>, vector<1x2x25xf32>,
    %c4_i32 = arith.constant 4 : i32
    %56 = arith.index_cast %c4_i32 : i32 to index
    %c0_34 = arith.constant 0 : index
    %c0_35 = arith.constant 0 : index
    %57 = vector.load %arg11[%56, %c0_34, %c0_35] : memref<8x2x25xf32, #tpu.memory_space<vmem>>, vector<1x2x25xf32>
    %58 = vector.shape_cast %57 : vector<1x2x25xf32> to vector<2x25xf32>
    %cst_36 = arith.constant dense<0.000000e+00> : vector<2x25xf32>
    %59 = tpu.matmul %51, %14, %cst_36 {dimension_numbers = #tpu.dot_dimension_numbers<[1], [0], [0], [1], [0, 0, 1, 1], [], []>} : vector<2x25xf32>, vector<25x25xf32>, vector<2x25xf32> -> vector<2x25xf32>
    %60 = arith.addf %58, %59 : vector<2x25xf32>
    %61 = math.tanh %60 : vector<2x25xf32>
    %62 = arith.index_cast %c4_i32 : i32 to index
    %c0_37 = arith.constant 0 : index
    %c0_38 = arith.constant 0 : index
    %63 = vector.load %arg11[%62, %c0_37, %c0_38] : memref<8x2x25xf32, #tpu.memory_space<vmem>>, vector<1x2x25xf32>
    %64 = vector.shape_cast %63 : vector<1x2x25xf32> to vector<2x25xf32>
    %65 = vector.shape_cast %61 : vector<2x25xf32> to vector<1x2x25xf32>
    tpu.vector_store %arg11[%62, %c0_37, %c0_38], %65 {strides = array<i32>} : memref<8x2x25xf32, #tpu.memory_space<vmem>>, vector<1x2x25xf32>,
    %c5_i32 = arith.constant 5 : i32
    %66 = arith.index_cast %c5_i32 : i32 to index
    %c0_39 = arith.constant 0 : index
    %c0_40 = arith.constant 0 : index
    %67 = vector.load %arg11[%66, %c0_39, %c0_40] : memref<8x2x25xf32, #tpu.memory_space<vmem>>, vector<1x2x25xf32>
    %68 = vector.shape_cast %67 : vector<1x2x25xf32> to vector<2x25xf32>
    %cst_41 = arith.constant dense<0.000000e+00> : vector<2x25xf32>
    %69 = tpu.matmul %61, %14, %cst_41 {dimension_numbers = #tpu.dot_dimension_numbers<[1], [0], [0], [1], [0, 0, 1, 1], [], []>} : vector<2x25xf32>, vector<25x25xf32>, vector<2x25xf32> -> vector<2x25xf32>
    %70 = arith.addf %68, %69 : vector<2x25xf32>
    %71 = math.tanh %70 : vector<2x25xf32>
    %72 = arith.index_cast %c5_i32 : i32 to index
    %c0_42 = arith.constant 0 : index
    %c0_43 = arith.constant 0 : index
    %73 = vector.load %arg11[%72, %c0_42, %c0_43] : memref<8x2x25xf32, #tpu.memory_space<vmem>>, vector<1x2x25xf32>
    %74 = vector.shape_cast %73 : vector<1x2x25xf32> to vector<2x25xf32>
    %75 = vector.shape_cast %71 : vector<2x25xf32> to vector<1x2x25xf32>
    tpu.vector_store %arg11[%72, %c0_42, %c0_43], %75 {strides = array<i32>} : memref<8x2x25xf32, #tpu.memory_space<vmem>>, vector<1x2x25xf32>,
    %c6_i32 = arith.constant 6 : i32
    %76 = arith.index_cast %c6_i32 : i32 to index
    %c0_44 = arith.constant 0 : index
    %c0_45 = arith.constant 0 : index
    %77 = vector.load %arg11[%76, %c0_44, %c0_45] : memref<8x2x25xf32, #tpu.memory_space<vmem>>, vector<1x2x25xf32>
    %78 = vector.shape_cast %77 : vector<1x2x25xf32> to vector<2x25xf32>
    %cst_46 = arith.constant dense<0.000000e+00> : vector<2x25xf32>
    %79 = tpu.matmul %71, %14, %cst_46 {dimension_numbers = #tpu.dot_dimension_numbers<[1], [0], [0], [1], [0, 0, 1, 1], [], []>} : vector<2x25xf32>, vector<25x25xf32>, vector<2x25xf32> -> vector<2x25xf32>
    %80 = arith.addf %78, %79 : vector<2x25xf32>
    %81 = math.tanh %80 : vector<2x25xf32>
    %82 = arith.index_cast %c6_i32 : i32 to index
    %c0_47 = arith.constant 0 : index
    %c0_48 = arith.constant 0 : index
    %83 = vector.load %arg11[%82, %c0_47, %c0_48] : memref<8x2x25xf32, #tpu.memory_space<vmem>>, vector<1x2x25xf32>
    %84 = vector.shape_cast %83 : vector<1x2x25xf32> to vector<2x25xf32>
    %85 = vector.shape_cast %81 : vector<2x25xf32> to vector<1x2x25xf32>
    tpu.vector_store %arg11[%82, %c0_47, %c0_48], %85 {strides = array<i32>} : memref<8x2x25xf32, #tpu.memory_space<vmem>>, vector<1x2x25xf32>,
    %c7_i32 = arith.constant 7 : i32
    %86 = arith.index_cast %c7_i32 : i32 to index
    %c0_49 = arith.constant 0 : index
    %c0_50 = arith.constant 0 : index
    %87 = vector.load %arg11[%86, %c0_49, %c0_50] : memref<8x2x25xf32, #tpu.memory_space<vmem>>, vector<1x2x25xf32>
    %88 = vector.shape_cast %87 : vector<1x2x25xf32> to vector<2x25xf32>
    %cst_51 = arith.constant dense<0.000000e+00> : vector<2x25xf32>
    %89 = tpu.matmul %81, %14, %cst_51 {dimension_numbers = #tpu.dot_dimension_numbers<[1], [0], [0], [1], [0, 0, 1, 1], [], []>} : vector<2x25xf32>, vector<25x25xf32>, vector<2x25xf32> -> vector<2x25xf32>
    %90 = arith.addf %88, %89 : vector<2x25xf32>
    %91 = math.tanh %90 : vector<2x25xf32>
    %92 = arith.index_cast %c7_i32 : i32 to index
    %c0_52 = arith.constant 0 : index
    %c0_53 = arith.constant 0 : index
    %93 = vector.load %arg11[%92, %c0_52, %c0_53] : memref<8x2x25xf32, #tpu.memory_space<vmem>>, vector<1x2x25xf32>
    %94 = vector.shape_cast %93 : vector<1x2x25xf32> to vector<2x25xf32>
    %95 = vector.shape_cast %91 : vector<2x25xf32> to vector<1x2x25xf32>
    tpu.vector_store %arg11[%92, %c0_52, %c0_53], %95 {strides = array<i32>} : memref<8x2x25xf32, #tpu.memory_space<vmem>>, vector<1x2x25xf32>,
    %c8_i32 = arith.constant 8 : i32
    %c0_54 = arith.constant 0 : index
    %c0_55 = arith.constant 0 : index
    %96 = vector.load %arg10[%c0_54, %c0_55] : memref<2x25xf32, #tpu.memory_space<vmem>>, vector<2x25xf32>
    tpu.vector_store %arg10[%c0_54, %c0_55], %91 {strides = array<i32>} : memref<2x25xf32, #tpu.memory_space<vmem>>, vector<2x25xf32>,
    %c0_56 = arith.constant 0 : index
    %c0_57 = arith.constant 0 : index
    %97 = vector.load %arg9[%c0_56, %c0_57] : memref<2x25xf32, #tpu.memory_space<vmem>>, vector<2x25xf32>
    tpu.vector_store %arg9[%c0_56, %c0_57], %91 {strides = array<i32>} : memref<2x25xf32, #tpu.memory_space<vmem>>, vector<2x25xf32>,
    %c0_58 = arith.constant 0 : index
    %c0_59 = arith.constant 0 : index
    %98 = vector.load %arg6[%c0_58, %c0_59] : memref<25x8xf32, #tpu.memory_space<vmem>>, vector<25x8xf32>
    %c0_60 = arith.constant 0 : index
    %c0_61 = arith.constant 0 : index
    %99 = vector.load %arg7[%c0_60, %c0_61] : memref<1x8xf32, #tpu.memory_space<vmem>>, vector<1x8xf32>
    %c0_62 = arith.constant 0 : index
    %c0_63 = arith.constant 0 : index
    %c0_64 = arith.constant 0 : index
    %100 = vector.load %arg11[%c0_62, %c0_63, %c0_64] : memref<8x2x25xf32, #tpu.memory_space<vmem>>, vector<8x2x25xf32>
    %101 = vector.shape_cast %100 : vector<8x2x25xf32> to vector<16x25xf32>
    %cst_65 = arith.constant dense<0.000000e+00> : vector<16x8xf32>
    %102 = tpu.matmul %101, %98, %cst_65 {dimension_numbers = #tpu.dot_dimension_numbers<[1], [0], [0], [1], [0, 0, 1, 1], [], []>} : vector<16x25xf32>, vector<25x8xf32>, vector<16x8xf32> -> vector<16x8xf32>
    %103 = vector.broadcast %99 : vector<1x8xf32> to vector<16x8xf32>
    %104 = arith.addf %102, %103 : vector<16x8xf32>
    %105 = vector.shape_cast %104 : vector<16x8xf32> to vector<8x2x8xf32>
    %c0_66 = arith.constant 0 : index
    %c0_67 = arith.constant 0 : index
    %c0_68 = arith.constant 0 : index
    %106 = vector.load %arg8[%c0_66, %c0_67, %c0_68] : memref<8x2x8xf32, #tpu.memory_space<vmem>>, vector<8x2x8xf32>
    tpu.vector_store %arg8[%c0_66, %c0_67, %c0_68], %105 {strides = array<i32>} : memref<8x2x8xf32, #tpu.memory_space<vmem>>, vector<8x2x8xf32>,
    return
  }
  func.func @transform_0(%arg0: i32) -> (i32, i32, i32) {
    %c0_i32 = arith.constant 0 : i32
    %c0_i32_0 = arith.constant 0 : i32
    %c0_i32_1 = arith.constant 0 : i32
    return %arg0, %c0_i32, %c0_i32_0 : i32, i32, i32
  }
  func.func @transform_1(%arg0: i32) -> (i32, i32) {
    %c0_i32 = arith.constant 0 : i32
    %c0_i32_0 = arith.constant 0 : i32
    %c0_i32_1 = arith.constant 0 : i32
    return %c0_i32, %c0_i32_0 : i32, i32
  }
  func.func @transform_2(%arg0: i32) -> (i32, i32) {
    %c0_i32 = arith.constant 0 : i32
    %c0_i32_0 = arith.constant 0 : i32
    %c0_i32_1 = arith.constant 0 : i32
    return %c0_i32, %c0_i32_0 : i32, i32
  }
  func.func @transform_3(%arg0: i32) -> (i32, i32) {
    %c0_i32 = arith.constant 0 : i32
    %c0_i32_0 = arith.constant 0 : i32
    %c0_i32_1 = arith.constant 0 : i32
    return %c0_i32, %c0_i32_0 : i32, i32
  }
  func.func @transform_4(%arg0: i32) -> (i32, i32) {
    %c0_i32 = arith.constant 0 : i32
    %c0_i32_0 = arith.constant 0 : i32
    %c0_i32_1 = arith.constant 0 : i32
    return %c0_i32, %c0_i32_0 : i32, i32
  }
  func.func @transform_5(%arg0: i32) -> (i32, i32) {
    %c0_i32 = arith.constant 0 : i32
    %c0_i32_0 = arith.constant 0 : i32
    %c0_i32_1 = arith.constant 0 : i32
    return %c0_i32, %c0_i32_0 : i32, i32
  }
  func.func @transform_6(%arg0: i32) -> (i32, i32) {
    %c0_i32 = arith.constant 0 : i32
    %c0_i32_0 = arith.constant 0 : i32
    %c0_i32_1 = arith.constant 0 : i32
    return %c0_i32, %c0_i32_0 : i32, i32
  }
  func.func @transform_7(%arg0: i32) -> (i32, i32, i32) {
    %c0_i32 = arith.constant 0 : i32
    %c0_i32_0 = arith.constant 0 : i32
    %c0_i32_1 = arith.constant 0 : i32
    return %arg0, %c0_i32, %c0_i32_0 : i32, i32, i32
  }
  func.func @transform_8(%arg0: i32) -> (i32, i32) {
    %c0_i32 = arith.constant 0 : i32
    %c0_i32_0 = arith.constant 0 : i32
    %c0_i32_1 = arith.constant 0 : i32
    return %c0_i32, %c0_i32_0 : i32, i32
  }
}

</mosaic_0001>

<llo_original>
// kernel: tpu_custom_call.1
$region0: #{tpu_custom_call.1}
  #allocation0 [shape = 'u32[]', space=smem, size = 0x4, offset = 0x4, fixed_abs, tag = 'smem constant byte address 0x4 - core index']
  #allocation1 [shape = 'u32[72,128]{1,0:T(1,128)}', space=vmem, size = 0x9000, scoped, tag = 'internal scratch']
  #allocation2 [shape = 'f32[2,25]{1,0:T(2,128)}', space=vmem, size = 0x400, scoped, tag = 'scratch operand']
  #allocation3 [shape = 'f32[8,2,25]{2,1,0:T(2,128)}', space=vmem, size = 0x2000, scoped, tag = 'scratch operand']
  %s0 = inlined_call_operand.vmem [shape: f32[8,2,1], index: 0, kind: input, shape index: {}]
  %s1 = inlined_call_operand.vmem [shape: f32[2,25], index: 1, kind: input, shape index: {}]
  %s2 = inlined_call_operand.vmem [shape: f32[1,25], index: 2, kind: input, shape index: {}]
  %s3 = inlined_call_operand.vmem [shape: f32[25,25], index: 3, kind: input, shape index: {}]
  %s4 = inlined_call_operand.vmem [shape: f32[1,25], index: 4, kind: input, shape index: {}]
  %s5 = inlined_call_operand.vmem [shape: f32[25,8], index: 5, kind: input, shape index: {}]
  %s6 = inlined_call_operand.vmem [shape: f32[1,8], index: 6, kind: input, shape index: {}]
  %s7 = inlined_call_operand.hbm [shape: f32[8,2,8], index: 7, kind: output, shape index: {0}]
  %s8 = inlined_call_operand.hbm [shape: f32[2,25], index: 8, kind: output, shape index: {1}]
  %9 = xla_tuple %s7, %s8
  %s10 = sld [smem:[#allocation0]]
  $region50: #{tpu_custom_call.1} parent=0
    _
  %s12 = ssub.s32 1, %s10
  %s13 = scalar_select 0, %s12, %s10
  $region1: #{tpu_custom_call.1} parent=0
    #allocation4 [shape = 'u8[8192]{0}', space=vmem, size = 0x2000, scoped, tag = 'output window, operand 0, single buffered']
    #allocation5 [shape = 's32[1]{0}', space=sflag, size = 0x4, scoped, tag = 'scoped memory for tpu_custom_call.1']
    #allocation6 [shape = 'u8[1024]{0}', space=vmem, size = 0x400, scoped, tag = 'output window, operand 1, single buffered']
    #allocation7 [shape = 's32[1]{0}', space=sflag, size = 0x4, scoped, tag = 'scoped memory for tpu_custom_call.1']
    %14 = vsyncpa [#allocation5], 0
    %15 = vsyncpa [#allocation7], 0
    // Predicated region
    $region2: #{tpu_custom_call.1} parent=1 // pred_check
      _
    $region3: #{tpu_custom_call.1} parent=1 // pred_check_branch
      %17 = sbr.rel (0) target = $region5
    $region4: #{tpu_custom_call.1} parent=1 // pred_region
      _
    $region5: #{tpu_custom_call.1} parent=1 // pred_fallthru
      _
    // Predicated region
    $region6: #{tpu_custom_call.1} parent=1 // pred_check
      _
    $region7: #{tpu_custom_call.1} parent=1 // pred_check_branch
      %19 = sbr.rel (0) target = $region9
    $region8: #{tpu_custom_call.1} parent=1 // pred_region
      _
    $region9: #{tpu_custom_call.1} parent=1 // pred_fallthru
      _
    // Predicated region
    $region10: #{tpu_custom_call.1} parent=1 // pred_check
      _
    $region11: #{tpu_custom_call.1} parent=1 // pred_check_branch
      %21 = sbr.rel (0) target = $region13
    $region12: #{tpu_custom_call.1} parent=1 // pred_region
      _
    $region13: #{tpu_custom_call.1} parent=1 // pred_fallthru
      _
    // Predicated region
    $region14: #{tpu_custom_call.1} parent=1 // pred_check
      _
    $region15: #{tpu_custom_call.1} parent=1 // pred_check_branch
      %23 = sbr.rel (0) target = $region17
    $region16: #{tpu_custom_call.1} parent=1 // pred_region
      _
    $region17: #{tpu_custom_call.1} parent=1 // pred_fallthru
      _
    // Predicated region
    $region18: #{tpu_custom_call.1} parent=1 // pred_check
      _
    $region19: #{tpu_custom_call.1} parent=1 // pred_check_branch
      %25 = sbr.rel (0) target = $region21
    $region20: #{tpu_custom_call.1} parent=1 // pred_region
      _
    $region21: #{tpu_custom_call.1} parent=1 // pred_fallthru
      _
    // Predicated region
    $region22: #{tpu_custom_call.1} parent=1 // pred_check
      _
    $region23: #{tpu_custom_call.1} parent=1 // pred_check_branch
      %27 = sbr.rel (0) target = $region25
    $region24: #{tpu_custom_call.1} parent=1 // pred_region
      _
    $region25: #{tpu_custom_call.1} parent=1 // pred_fallthru
      _
    // Predicated region
    $region26: #{tpu_custom_call.1} parent=1 // pred_check
      _
    $region27: #{tpu_custom_call.1} parent=1 // pred_check_branch
      %29 = sbr.rel (0) target = $region29
    $region28: #{tpu_custom_call.1} parent=1 // pred_region
      _
    $region29: #{tpu_custom_call.1} parent=1 // pred_fallthru
      _
    %p30 = scmp.eq.s32.totalorder 0, 0
    // Predicated region
    $region30: #{tpu_custom_call.1} parent=1 // pred_check
      %p31 = pneg %p30
    $region31: #{tpu_custom_call.1} parent=1 // pred_check_branch
      %33 = sbr.rel (%p31) target = $region33
    $region32: #{tpu_custom_call.1} parent=1 // pred_region
      %v34 = vld [vmem:[%s1] sm:$0x3]
      %vm35 = vcmask 197632
      %36 = vst.msk [vmem:[#allocation2] sm:$0x3] %vm35, %v34
    $region33: #{tpu_custom_call.1} parent=1 // pred_fallthru
      _
    %v37 = vld [vmem:[%s0] sm:$0x3]
    %v38 = vld [vmem:[%s0 + $0x2] sm:$0x3]
    %v39 = vld [vmem:[%s0 + $0x4] sm:$0x3]
    %v40 = vld [vmem:[%s0 + $0x6] sm:$0x3]
    %v41 = vld [vmem:[%s0 + $0x8] sm:$0x3]
    %v42 = vld [vmem:[%s0 + $0xa] sm:$0x3]
    %v43 = vld [vmem:[%s0 + $0xc] sm:$0x3]
    %v44 = vld [vmem:[%s0 + $0xe] sm:$0x3]
    %v45 = vld [vmem:[%s2] sm:$0x1]
    %v46 = vld [vmem:[%s4] sm:$0x1]
    %48 = vset.pattern.permute.xlu0 0
    %49 = vperm.xlu0 %48, %v37
    %v50 = vpop.permute.xlu0 %49
    %53 = vset.pattern.permute.xlu0 0
    %54 = vperm.xlu0 %53, %v38
    %v55 = vpop.permute.xlu0 %54
    %58 = vset.pattern.permute.xlu0 0
    %59 = vperm.xlu0 %58, %v39
    %v60 = vpop.permute.xlu0 %59
    %63 = vset.pattern.permute.xlu0 0
    %64 = vperm.xlu0 %63, %v40
    %v65 = vpop.permute.xlu0 %64
    %68 = vset.pattern.permute.xlu0 0
    %69 = vperm.xlu0 %68, %v41
    %v70 = vpop.permute.xlu0 %69
    %73 = vset.pattern.permute.xlu0 0
    %74 = vperm.xlu0 %73, %v42
    %v75 = vpop.permute.xlu0 %74
    %78 = vset.pattern.permute.xlu0 0
    %79 = vperm.xlu0 %78, %v43
    %v80 = vpop.permute.xlu0 %79
    %83 = vset.pattern.permute.xlu0 0
    %84 = vperm.xlu0 %83, %v44
    %v85 = vpop.permute.xlu0 %84
    %v88 = vperm.slane %v45, 0
    %v90 = vmul.f32 %v50, %v88
    %v91 = vmul.f32 %v55, %v88
    %v92 = vmul.f32 %v60, %v88
    %v93 = vmul.f32 %v65, %v88
    %v94 = vmul.f32 %v70, %v88
    %v95 = vmul.f32 %v75, %v88
    %v96 = vmul.f32 %v80, %v88
    %v97 = vmul.f32 %v85, %v88
    %v99 = vperm.slane %v46, 0
    %v101 = vadd.f32 %v90, %v99
    %v102 = vadd.f32 %v91, %v99
    %v103 = vadd.f32 %v92, %v99
    %v104 = vadd.f32 %v93, %v99
    %v105 = vadd.f32 %v94, %v99
    %v106 = vadd.f32 %v95, %v99
    %v107 = vadd.f32 %v96, %v99
    %v108 = vadd.f32 %v97, %v99
    %vm109 = vcmask 197632
    %110 = vst.msk [vmem:[#allocation3] sm:$0x3] %vm109, %v101
    %111 = vst.msk [vmem:[#allocation3 + $0x2] sm:$0x3] %vm109, %v102
    %112 = vst.msk [vmem:[#allocation3 + $0x4] sm:$0x3] %vm109, %v103
    %113 = vst.msk [vmem:[#allocation3 + $0x6] sm:$0x3] %vm109, %v104
    %114 = vst.msk [vmem:[#allocation3 + $0x8] sm:$0x3] %vm109, %v105
    %115 = vst.msk [vmem:[#allocation3 + $0xa] sm:$0x3] %vm109, %v106
    %116 = vst.msk [vmem:[#allocation3 + $0xc] sm:$0x3] %vm109, %v107
    %117 = vst.msk [vmem:[#allocation3 + $0xe] sm:$0x3] %vm109, %v108
    %v118 = vld [vmem:[%s3] sm:$0xff]
    %v119 = vld [vmem:[%s3 + $0x8] sm:$0xff]
    %v120 = vld [vmem:[%s3 + $0x10] sm:$0xff]
    %v121 = vld [vmem:[%s3 + $0x18] sm:$0x1]
    %v122 = vld [vmem:[#allocation2] sm:$0x3]
    %v123 = vld [vmem:[#allocation3] sm:$0x3]
    %vm124 = vcmask 203776
    %v126 = vsel %vm124, %v122, 0
    %vm128 = vcmask 1040384
    %v130 = vsel %vm128, %v121, 0
    %132 = vmatpush.msra.mxu0 0.0
    %133 = vmatpush.msra.mxu0 0.0
    %134 = vmatpush.msra.mxu0 0.0
    %135 = vmatpush.msra.mxu0 0.0
    %136 = vmatpush.msra.mxu0 0.0
    %137 = vmatpush.msra.mxu0 0.0
    %138 = vmatpush.msra.mxu0 0.0
    %139 = vmatpush.msra.mxu0 0.0
    %140 = vmatpush.msra.mxu0 0.0
    %141 = vmatpush.msra.mxu0 0.0
    %142 = vmatpush.msra.mxu0 0.0
    %143 = vmatpush.msra.mxu0 0.0
    %144 = vmatpush.msra.mxu0 %v130
    %145 = vmatpush.msra.mxu0 %v120
    %146 = vmatpush.msra.mxu0 %v119
    %147 = vmatpush.msra.mxu0 %v118
    %148 = vmatmul.f32.gmra.mxu0 %v126
    %v149 = vpop.f32.mrf.mxu0
    %v150 = vadd.f32 0.0, %v149
    %151 = vdwg.mxu0
    %v152 = vadd.f32 %v123, %v150
    %v153 = vtanh.pop %v152
    %154 = vst.msk [vmem:[#allocation3] sm:$0x3] %vm109, %v153
    %s155 = scalar_lea.vmem [#allocation3], 2
    %v156 = vld [vmem:[%s155] sm:$0x3]
    %v158 = vsel %vm124, %v153, 0
    %160 = vmatpush.msra.mxu0 0.0
    %161 = vmatpush.msra.mxu0 0.0
    %162 = vmatpush.msra.mxu0 0.0
    %163 = vmatpush.msra.mxu0 0.0
    %164 = vmatpush.msra.mxu0 0.0
    %165 = vmatpush.msra.mxu0 0.0
    %166 = vmatpush.msra.mxu0 0.0
    %167 = vmatpush.msra.mxu0 0.0
    %168 = vmatpush.msra.mxu0 0.0
    %169 = vmatpush.msra.mxu0 0.0
    %170 = vmatpush.msra.mxu0 0.0
    %171 = vmatpush.msra.mxu0 0.0
    %172 = vmatpush.msra.mxu0 %v130
    %173 = vmatpush.msra.mxu0 %v120
    %174 = vmatpush.msra.mxu0 %v119
    %175 = vmatpush.msra.mxu0 %v118
    %176 = vmatmul.f32.gmra.mxu0 %v158
    %v177 = vpop.f32.mrf.mxu0
    %v178 = vadd.f32 0.0, %v177
    %179 = vdwg.mxu0
    %v180 = vadd.f32 %v156, %v178
    %v181 = vtanh.pop %v180
    %182 = vst.msk [vmem:[%s155] sm:$0x3] %vm109, %v181
    %s183 = scalar_lea.vmem [#allocation3], 4
    %v184 = vld [vmem:[%s183] sm:$0x3]
    %v186 = vsel %vm124, %v181, 0
    %188 = vmatpush.msra.mxu0 0.0
    %189 = vmatpush.msra.mxu0 0.0
    %190 = vmatpush.msra.mxu0 0.0
    %191 = vmatpush.msra.mxu0 0.0
    %192 = vmatpush.msra.mxu0 0.0
    %193 = vmatpush.msra.mxu0 0.0
    %194 = vmatpush.msra.mxu0 0.0
    %195 = vmatpush.msra.mxu0 0.0
    %196 = vmatpush.msra.mxu0 0.0
    %197 = vmatpush.msra.mxu0 0.0
    %198 = vmatpush.msra.mxu0 0.0
    %199 = vmatpush.msra.mxu0 0.0
    %200 = vmatpush.msra.mxu0 %v130
    %201 = vmatpush.msra.mxu0 %v120
    %202 = vmatpush.msra.mxu0 %v119
    %203 = vmatpush.msra.mxu0 %v118
    %204 = vmatmul.f32.gmra.mxu0 %v186
    %v205 = vpop.f32.mrf.mxu0
    %v206 = vadd.f32 0.0, %v205
    %207 = vdwg.mxu0
    %v208 = vadd.f32 %v184, %v206
    %v209 = vtanh.pop %v208
    %210 = vst.msk [vmem:[%s183] sm:$0x3] %vm109, %v209
    %s211 = scalar_lea.vmem [#allocation3], 6
    %v212 = vld [vmem:[%s211] sm:$0x3]
    %v214 = vsel %vm124, %v209, 0
    %216 = vmatpush.msra.mxu0 0.0
    %217 = vmatpush.msra.mxu0 0.0
    %218 = vmatpush.msra.mxu0 0.0
    %219 = vmatpush.msra.mxu0 0.0
    %220 = vmatpush.msra.mxu0 0.0
    %221 = vmatpush.msra.mxu0 0.0
    %222 = vmatpush.msra.mxu0 0.0
    %223 = vmatpush.msra.mxu0 0.0
    %224 = vmatpush.msra.mxu0 0.0
    %225 = vmatpush.msra.mxu0 0.0
    %226 = vmatpush.msra.mxu0 0.0
    %227 = vmatpush.msra.mxu0 0.0
    %228 = vmatpush.msra.mxu0 %v130
    %229 = vmatpush.msra.mxu0 %v120
    %230 = vmatpush.msra.mxu0 %v119
    %231 = vmatpush.msra.mxu0 %v118
    %232 = vmatmul.f32.gmra.mxu0 %v214
    %v233 = vpop.f32.mrf.mxu0
    %v234 = vadd.f32 0.0, %v233
    %235 = vdwg.mxu0
    %v236 = vadd.f32 %v212, %v234
    %v237 = vtanh.pop %v236
    %238 = vst.msk [vmem:[%s211] sm:$0x3] %vm109, %v237
    %s239 = scalar_lea.vmem [#allocation3], 8
    %v240 = vld [vmem:[%s239] sm:$0x3]
    %v242 = vsel %vm124, %v237, 0
    %244 = vmatpush.msra.mxu0 0.0
    %245 = vmatpush.msra.mxu0 0.0
    %246 = vmatpush.msra.mxu0 0.0
    %247 = vmatpush.msra.mxu0 0.0
    %248 = vmatpush.msra.mxu0 0.0
    %249 = vmatpush.msra.mxu0 0.0
    %250 = vmatpush.msra.mxu0 0.0
    %251 = vmatpush.msra.mxu0 0.0
    %252 = vmatpush.msra.mxu0 0.0
    %253 = vmatpush.msra.mxu0 0.0
    %254 = vmatpush.msra.mxu0 0.0
    %255 = vmatpush.msra.mxu0 0.0
    %256 = vmatpush.msra.mxu0 %v130
    %257 = vmatpush.msra.mxu0 %v120
    %258 = vmatpush.msra.mxu0 %v119
    %259 = vmatpush.msra.mxu0 %v118
    %260 = vmatmul.f32.gmra.mxu0 %v242
    %v261 = vpop.f32.mrf.mxu0
    %v262 = vadd.f32 0.0, %v261
    %263 = vdwg.mxu0
    %v264 = vadd.f32 %v240, %v262
    %v265 = vtanh.pop %v264
    %266 = vst.msk [vmem:[%s239] sm:$0x3] %vm109, %v265
    %s267 = scalar_lea.vmem [#allocation3], 10
    %v268 = vld [vmem:[%s267] sm:$0x3]
    %v270 = vsel %vm124, %v265, 0
    %272 = vmatpush.msra.mxu0 0.0
    %273 = vmatpush.msra.mxu0 0.0
    %274 = vmatpush.msra.mxu0 0.0
    %275 = vmatpush.msra.mxu0 0.0
    %276 = vmatpush.msra.mxu0 0.0
    %277 = vmatpush.msra.mxu0 0.0
    %278 = vmatpush.msra.mxu0 0.0
    %279 = vmatpush.msra.mxu0 0.0
    %280 = vmatpush.msra.mxu0 0.0
    %281 = vmatpush.msra.mxu0 0.0
    %282 = vmatpush.msra.mxu0 0.0
    %283 = vmatpush.msra.mxu0 0.0
    %284 = vmatpush.msra.mxu0 %v130
    %285 = vmatpush.msra.mxu0 %v120
    %286 = vmatpush.msra.mxu0 %v119
    %287 = vmatpush.msra.mxu0 %v118
    %288 = vmatmul.f32.gmra.mxu0 %v270
    %v289 = vpop.f32.mrf.mxu0
    %v290 = vadd.f32 0.0, %v289
    %291 = vdwg.mxu0
    %v292 = vadd.f32 %v268, %v290
    %v293 = vtanh.pop %v292
    %294 = vst.msk [vmem:[%s267] sm:$0x3] %vm109, %v293
    %s295 = scalar_lea.vmem [#allocation3], 12
    %v296 = vld [vmem:[%s295] sm:$0x3]
    %v298 = vsel %vm124, %v293, 0
    %300 = vmatpush.msra.mxu0 0.0
    %301 = vmatpush.msra.mxu0 0.0
    %302 = vmatpush.msra.mxu0 0.0
    %303 = vmatpush.msra.mxu0 0.0
    %304 = vmatpush.msra.mxu0 0.0
    %305 = vmatpush.msra.mxu0 0.0
    %306 = vmatpush.msra.mxu0 0.0
    %307 = vmatpush.msra.mxu0 0.0
    %308 = vmatpush.msra.mxu0 0.0
    %309 = vmatpush.msra.mxu0 0.0
    %310 = vmatpush.msra.mxu0 0.0
    %311 = vmatpush.msra.mxu0 0.0
    %312 = vmatpush.msra.mxu0 %v130
    %313 = vmatpush.msra.mxu0 %v120
    %314 = vmatpush.msra.mxu0 %v119
    %315 = vmatpush.msra.mxu0 %v118
    %316 = vmatmul.f32.gmra.mxu0 %v298
    %v317 = vpop.f32.mrf.mxu0
    %v318 = vadd.f32 0.0, %v317
    %319 = vdwg.mxu0
    %v320 = vadd.f32 %v296, %v318
    %v321 = vtanh.pop %v320
    %322 = vst.msk [vmem:[%s295] sm:$0x3] %vm109, %v321
    %s323 = scalar_lea.vmem [#allocation3], 14
    %v324 = vld [vmem:[%s323] sm:$0x3]
    %v326 = vsel %vm124, %v321, 0
    %328 = vmatpush.msra.mxu0 0.0
    %329 = vmatpush.msra.mxu0 0.0
    %330 = vmatpush.msra.mxu0 0.0
    %331 = vmatpush.msra.mxu0 0.0
    %332 = vmatpush.msra.mxu0 0.0
    %333 = vmatpush.msra.mxu0 0.0
    %334 = vmatpush.msra.mxu0 0.0
    %335 = vmatpush.msra.mxu0 0.0
    %336 = vmatpush.msra.mxu0 0.0
    %337 = vmatpush.msra.mxu0 0.0
    %338 = vmatpush.msra.mxu0 0.0
    %339 = vmatpush.msra.mxu0 0.0
    %340 = vmatpush.msra.mxu0 %v130
    %341 = vmatpush.msra.mxu0 %v120
    %342 = vmatpush.msra.mxu0 %v119
    %343 = vmatpush.msra.mxu0 %v118
    %344 = vmatmul.f32.gmra.mxu0 %v326
    %v345 = vpop.f32.mrf.mxu0
    %v346 = vadd.f32 0.0, %v345
    %347 = vdwg.mxu0
    %v348 = vadd.f32 %v324, %v346
    %v349 = vtanh.pop %v348
    %350 = vst.msk [vmem:[%s323] sm:$0x3] %vm109, %v349
    %351 = vst.msk [vmem:[#allocation2] sm:$0x3] %vm109, %v349
    %352 = vst.msk [vmem:[#allocation6] sm:$0x3] %vm109, %v349
    %v353 = vld [vmem:[%s5] sm:$0xff]
    %v354 = vld [vmem:[%s5 + $0x8] sm:$0xff]
    %v355 = vld [vmem:[%s5 + $0x10] sm:$0xff]
    %v356 = vld [vmem:[%s5 + $0x18] sm:$0x1]
    %v357 = vld [vmem:[%s6] sm:$0x1]
    %v358 = vld [vmem:[#allocation3] sm:$0x3]
    %v359 = vld [vmem:[#allocation3 + $0x2] sm:$0x3]
    %v360 = vld [vmem:[#allocation3 + $0x4] sm:$0x3]
    %v361 = vld [vmem:[#allocation3 + $0x6] sm:$0x3]
    %v362 = vld [vmem:[#allocation3 + $0x8] sm:$0x3]
    %v363 = vld [vmem:[#allocation3 + $0xa] sm:$0x3]
    %v364 = vld [vmem:[#allocation3 + $0xc] sm:$0x3]
    %v365 = vld [vmem:[#allocation3 + $0xe] sm:$0x3]
    %v367 = vperm.slane %v357, 0
    %377 = vst [vmem:[#allocation1] ss:$4 sm:$0xff] %v358
    %s378 = scalar_lea.vmem [#allocation1], 1
    %379 = vst [vmem:[%s378] ss:$4 sm:$0xff] %v359
    %s380 = scalar_lea.vmem [#allocation1], 2
    %381 = vst [vmem:[%s380] ss:$4 sm:$0xff] %v360
    %s382 = scalar_lea.vmem [#allocation1], 3
    %383 = vst [vmem:[%s382] ss:$4 sm:$0xff] %v361
    %s384 = scalar_lea.vmem [#allocation1], 32
    %385 = vst [vmem:[%s384] ss:$4 sm:$0xff] %v362
    %s386 = scalar_lea.vmem [#allocation1], 33
    %387 = vst [vmem:[%s386] ss:$4 sm:$0xff] %v363
    %s388 = scalar_lea.vmem [#allocation1], 34
    %389 = vst [vmem:[%s388] ss:$4 sm:$0xff] %v364
    %s390 = scalar_lea.vmem [#allocation1], 35
    %391 = vst [vmem:[%s390] ss:$4 sm:$0xff] %v365
    %v392 = vld.sshfl [vmem:[#allocation1] sm:$0xff pattern:$0x73625140]
    %v393 = vld.sshfl [vmem:[#allocation1 + $0x20] sm:$0xff pattern:$0x73625140]
    %v394 = vsel %vm124, %v392, 0
    %v396 = vsel %vm124, %v393, 0
    %v399 = vsel %vm128, %v356, 0
    %401 = vmatpush.msra.mxu0 0.0
    %402 = vmatpush.msra.mxu0 0.0
    %403 = vmatpush.msra.mxu0 0.0
    %404 = vmatpush.msra.mxu0 0.0
    %405 = vmatpush.msra.mxu0 0.0
    %406 = vmatpush.msra.mxu0 0.0
    %407 = vmatpush.msra.mxu0 0.0
    %408 = vmatpush.msra.mxu0 0.0
    %409 = vmatpush.msra.mxu0 0.0
    %410 = vmatpush.msra.mxu0 0.0
    %411 = vmatpush.msra.mxu0 0.0
    %412 = vmatpush.msra.mxu0 0.0
    %413 = vmatpush.msra.mxu0 %v399
    %414 = vmatpush.msra.mxu0 %v355
    %415 = vmatpush.msra.mxu0 %v354
    %416 = vmatpush.msra.mxu0 %v353
    %417 = vmatmul.f32.gmra.mxu0 %v394
    %v418 = vpop.f32.mrf.mxu0
    %v419 = vadd.f32 %v367, %v418
    %420 = vmatmul.f32.gmra.mxu0 %v396
    %v421 = vpop.f32.mrf.mxu0
    %v422 = vadd.f32 %v367, %v421
    %423 = vdwg.mxu0
    %v426 = vrot.slane %v419, 2
    %v427 = vrot.slane %v419, 4
    %v428 = vrot.slane %v419, 6
    %v429 = vrot.slane %v422, 2
    %v430 = vrot.slane %v422, 4
    %v431 = vrot.slane %v422, 6
    %vm438 = vcmask 58368
    %439 = vst.msk [vmem:[#allocation4] sm:$0x3] %vm438, %v419
    %440 = vst.msk [vmem:[#allocation4 + $0x2] sm:$0x3] %vm438, %v426
    %441 = vst.msk [vmem:[#allocation4 + $0x4] sm:$0x3] %vm438, %v427
    %442 = vst.msk [vmem:[#allocation4 + $0x6] sm:$0x3] %vm438, %v428
    %443 = vst.msk [vmem:[#allocation4 + $0x8] sm:$0x3] %vm438, %v422
    %444 = vst.msk [vmem:[#allocation4 + $0xa] sm:$0x3] %vm438, %v429
    %445 = vst.msk [vmem:[#allocation4 + $0xc] sm:$0x3] %vm438, %v430
    %446 = vst.msk [vmem:[#allocation4 + $0xe] sm:$0x3] %vm438, %v431
    // Predicated region
    $region34: #{tpu_custom_call.1} parent=1 // pred_check
      _
    $region35: #{tpu_custom_call.1} parent=1 // pred_check_branch
      %448 = sbr.rel (0) target = $region37
    $region36: #{tpu_custom_call.1} parent=1 // pred_region
      %450 = vsyncadd [#allocation5], 0
      %s451 = sshll.u32 [#allocation4], 4
      %s452 = int_to_ptr.vmem [resolvable:$true] %s451
      %s453 = sshll.u32 %s7, 4
      %s454 = int_to_ptr.hbm [resolvable:$true] %s453
      %459 = dma.vmem_to_hbm [thread:$0]  %s452, 256, %s454, [#allocation5], 32, 32, 2
    $region37: #{tpu_custom_call.1} parent=1 // pred_fallthru
      _
    // Predicated region
    $region38: #{tpu_custom_call.1} parent=1 // pred_check
      _
    $region39: #{tpu_custom_call.1} parent=1 // pred_check_branch
      %461 = sbr.rel (0) target = $region41
    $region40: #{tpu_custom_call.1} parent=1 // pred_region
      %463 = vsyncadd [#allocation7], 0
      %s465 = sshll.u32 [#allocation6], 4
      %s466 = int_to_ptr.vmem [resolvable:$true] %s465
      %s467 = sshll.u32 %s8, 4
      %s468 = int_to_ptr.hbm [resolvable:$true] %s467
      %470 = dma.vmem_to_hbm [thread:$0]  %s466, 32, %s468, [#allocation7]
    $region41: #{tpu_custom_call.1} parent=1 // pred_fallthru
      _
    // Predicated region
    $region42: #{tpu_custom_call.1} parent=1 // pred_check
      _
    $region43: #{tpu_custom_call.1} parent=1 // pred_check_branch
      %472 = sbr.rel (0) target = $region45
    $region44: #{tpu_custom_call.1} parent=1 // pred_region
      %474 = dma.done [#allocation5], 256
    $region45: #{tpu_custom_call.1} parent=1 // pred_fallthru
      _
    // Predicated region
    $region46: #{tpu_custom_call.1} parent=1 // pred_check
      _
    $region47: #{tpu_custom_call.1} parent=1 // pred_check_branch
      %476 = sbr.rel (0) target = $region49
    $region48: #{tpu_custom_call.1} parent=1 // pred_region
      %478 = dma.done [#allocation7], 32
    $region49: #{tpu_custom_call.1} parent=1 // pred_fallthru
      _
    %479 = vsyncpa [#allocation5], 1
    %480 = vsyncpa [#allocation7], 1

</llo_original>
